<compile_context>
chip_gen: v5e
topology: v5e:2x2
jax: 0.10.0
libtpu: 0.0.40
codegen_flags: <defaults>
</compile_context>

<pallas_src>
import functools

import jax
import jax.numpy as jnp
from jax.experimental import pallas as pl
from jax.experimental.pallas import tpu as pltpu

LN_EPS = 1e-5  # PyTorch nn.LayerNorm default


def _round_up(v, m):
    return ((v + m - 1) // m) * m


def _fused_kernel(x_ref, w1_ref, b1_ref, g_ref, beta_ref, w2_ref, b2_ref, o_ref,
                  *, hidden_dim, approx_swish):
    """Both SplitPredictor branches fused: (Linear -> LayerNorm -> Swish -> Linear) x2."""
    w1 = w1_ref[...]                      # already pre-cast to the matmul dtype
    x = x_ref[...].astype(w1.dtype)       # streamed input; cast is a no-op in f32 mode

    # Fused first Linear of both branches: [TM, D_in] @ [D_in, 2H], f32 accumulation.
    h = jnp.dot(x, w1, preferred_element_type=jnp.float32) + b1_ref[...]

    def ln_swish(hh, g, b):
        # LayerNorm (biased variance, elementwise affine) over this branch's H lanes.
        mu = jnp.mean(hh, axis=-1, keepdims=True)
        d = hh - mu
        var = jnp.mean(d * d, axis=-1, keepdims=True)
        hn = d * jax.lax.rsqrt(var + LN_EPS) * g + b
        if approx_swish:
            # Swish: x * sigmoid(x); exp + approx reciprocal both land on the EUP slot.
            return hn * pl.reciprocal(1.0 + jnp.exp(-hn), approx=True)
        return hn * jax.nn.sigmoid(hn)

    H = hidden_dim  # static Python int; multiple of 128, so slices sit on vreg lanes
    a1 = ln_swish(h[:, :H], g_ref[:, :H], beta_ref[:, :H])
    a2 = ln_swish(h[:, H:], g_ref[:, H:], beta_ref[:, H:])
    a = jnp.concatenate([a1, a2], axis=-1)  # [TM, 2H], lane concat at vreg boundary

    w2 = w2_ref[...]                        # already pre-cast; block-diag, lane-padded
    y = jnp.dot(a.astype(w2.dtype), w2, preferred_element_type=jnp.float32) + b2_ref[...]
    o_ref[...] = y.astype(o_ref.dtype)      # lane-dense full-width store


def _pack_params(params, *, matmul_dtype, d_out_padded):
    """Pack per-branch weights into fused layouts (done once, outside the kernel)."""
    mm = matmul_dtype if matmul_dtype is not None else params["w1_1"].dtype

    # MXU operands pre-cast once here (no per-step VPU casts inside the kernel).
    w1 = jnp.concatenate([params["w1_1"], params["w1_2"]], axis=1).astype(mm)  # [D_in,2H]

    # Biases / LN affine stay f32: they are applied to f32 accumulations / LN math.
    b1 = jnp.concatenate([params["b1_1"], params["b1_2"]], axis=1)        # [1, 2H]
    g = jnp.concatenate([params["g_1"], params["g_2"]], axis=1)           # [1, 2H]
    beta = jnp.concatenate([params["beta_1"], params["beta_2"]], axis=1)  # [1, 2H]

    h, d_sub = params["w2_1"].shape
    d_out = 2 * d_sub
    z = jnp.zeros((h, d_sub), params["w2_1"].dtype)
    w2 = jnp.concatenate(
        [jnp.concatenate([params["w2_1"], z], axis=1),
         jnp.concatenate([z, params["w2_2"]], axis=1)], axis=0)           # [2H, D_out]
    b2 = jnp.concatenate([params["b2_1"], params["b2_2"]], axis=1)        # [1, D_out]

    # Pad output lanes to a multiple of 128 so the kernel's output stores are
    # unmasked full-lane vst (padding columns are exact zeros).
    if d_out_padded > d_out:
        w2 = jnp.pad(w2, ((0, 0), (0, d_out_padded - d_out)))
        b2 = jnp.pad(b2, ((0, 0), (0, d_out_padded - d_out)))
    w2 = w2.astype(mm)
    return w1, b1, g, beta, w2, b2


def split_predictor(x, params, *, tm_cap=1024, matmul_dtype=jnp.bfloat16):
    """Pallas implementation of SplitPredictor.forward.

    params: dict with per-branch weights already in [in, out] layout.
    matmul_dtype: MXU operand dtype (default bf16, f32 accumulation; ~1e-3 relative
      error vs the f32 reference). Pass None for an exact-f32 MXU path.
    """
    n, d_in = x.shape
    hidden_dim = params["w1_1"].shape[1]
    # Lane slices / concat in the kernel are free only when H sits exactly on a
    # 128-lane vreg boundary; guard against silent XLU-relayout regressions.
    assert hidden_dim % 128 == 0, "hidden_dim must be a multiple of 128"
    assert tm_cap % 8 == 0, "tm_cap must be a multiple of 8"

    d_out = 2 * params["w2_1"].shape[1]
    d_out_p = _round_up(d_out, 128)   # lane-dense output slab width

    w1, b1, g, beta, w2, b2 = _pack_params(
        params, matmul_dtype=matmul_dtype, d_out_padded=d_out_p)
    h2 = 2 * hidden_dim

    # Batch tile: single tile for tiny N; otherwise at least 2 grid steps so the
    # "parallel" batch axis can shard across v7x's two TensorCores, capped at tm_cap.
    # Per-step footprint (double-buffered x/out tiles + resident weights) is far
    # below even v7x's 64 MiB VMEM at tm_cap=1024, so no vmem_limit_bytes needed.
    if n <= 16:
        tm = n
    else:
        tm = min(tm_cap, _round_up(pl.cdiv(n, 2), 8))
    grid = (pl.cdiv(n, tm),)

    def resident(shape):
        return pl.BlockSpec(shape, lambda i: (0, 0))

    inputs = (x, w1, b1, g, beta, w2, b2)
    out_itemsize = jnp.dtype(x.dtype).itemsize
    cost = pl.CostEstimate(
        flops=2 * n * d_in * h2 + 2 * n * h2 * d_out_p + 10 * n * h2,
        transcendentals=n * h2,  # sigmoid exp
        bytes_accessed=sum(int(a.size) * a.dtype.itemsize for a in inputs)
        + n * d_out_p * out_itemsize,
    )

    kernel = functools.partial(_fused_kernel, hidden_dim=hidden_dim,
                               approx_swish=matmul_dtype is not None)

    out_padded = pl.pallas_call(
        kernel,
        out_shape=jax.ShapeDtypeStruct((n, d_out_p), x.dtype),
        grid_spec=pltpu.PrefetchScalarGridSpec(
            num_scalar_prefetch=0,
            grid=grid,
            in_specs=[
                pl.BlockSpec((tm, d_in), lambda i: (i, 0)),   # x: batch-tiled stream
                resident((d_in, h2)),                         # fused W1 (pre-cast)
                resident((1, h2)),                            # fused b1 (f32)
                resident((1, h2)),                            # fused gamma (f32)
                resident((1, h2)),                            # fused beta (f32)
                resident((h2, d_out_p)),                      # block-diag W2 (pre-cast)
                resident((1, d_out_p)),                       # fused b2 (f32, padded)
            ],
            out_specs=pl.BlockSpec((tm, d_out_p), lambda i: (i, 0)),
        ),
        compiler_params=pltpu.CompilerParams(
            dimension_semantics=("parallel",),
        ),
        cost_estimate=cost,
    )(*inputs)

    return out_padded[:, :d_out] if d_out_p != d_out else out_padded


def _reference(x, p):
    """Pure-JAX reference matching the PyTorch module semantics (f32)."""
    def branch(w1, b1, g, beta, w2, b2):
        h = x @ w1 + b1
        mu = jnp.mean(h, axis=-1, keepdims=True)
        var = jnp.mean((h - mu) ** 2, axis=-1, keepdims=True)
        hn = (h - mu) / jnp.sqrt(var + LN_EPS) * g + beta
        a = hn * jax.nn.sigmoid(hn)
        return a @ w2 + b2

    y1 = branch(p["w1_1"], p["b1_1"], p["g_1"], p["beta_1"], p["w2_1"], p["b2_1"])
    y2 = branch(p["w1_2"], p["b1_2"], p["g_2"], p["beta_2"], p["w2_2"], p["b2_2"])
    return jnp.concatenate([y1, y2], axis=1)


def make_params(key, input_dim, output_dim, hidden_dim):
    sub = output_dim // 2
    ks = jax.random.split(key, 8)
    scale1 = 1.0 / jnp.sqrt(input_dim)
    scale2 = 1.0 / jnp.sqrt(hidden_dim)
    p = {}
    for br, (kw1, kb1, kw2, kb2) in zip(("1", "2"), (ks[0:4], ks[4:8])):
        p[f"w1_{br}"] = jax.random.uniform(
            kw1, (input_dim, hidden_dim), jnp.float32, -scale1, scale1)
        p[f"b1_{br}"] = jax.random.uniform(
            kb1, (1, hidden_dim), jnp.float32, -scale1, scale1)
        p[f"g_{br}"] = jnp.ones((1, hidden_dim), jnp.float32)
        p[f"beta_{br}"] = jnp.zeros((1, hidden_dim), jnp.float32)
        p[f"w2_{br}"] = jax.random.uniform(
            kw2, (hidden_dim, sub), jnp.float32, -scale2, scale2)
        p[f"b2_{br}"] = jax.random.uniform(
            kb2, (1, sub), jnp.float32, -scale2, scale2)
    return p


if __name__ == "__main__":
    INPUT_DIM = 32
    OUTPUT_DIM = 16
    HIDDEN_DIM = 128
    BATCH = 8

    key = jax.random.PRNGKey(0)
    kx, kp = jax.random.split(key)
    x = jax.random.normal(kx, (BATCH, INPUT_DIM), jnp.float32)
    params = make_params(kp, INPUT_DIM, OUTPUT_DIM, HIDDEN_DIM)

    ref = _reference(x, params)

    # Exact-precision path (f32 MXU operands): must match reference tightly.
    out_f32 = jax.block_until_ready(split_predictor(x, params, matmul_dtype=None))
    assert out_f32.shape == (BATCH, OUTPUT_DIM), out_f32.shape
    assert jnp.allclose(out_f32, ref, atol=1e-4, rtol=1e-4), "f32 path mismatch"

    # Default fast path (bf16 MXU operands, f32 accumulation): looser tolerance.
    out_bf16 = jax.block_until_ready(split_predictor(x, params))
    assert out_bf16.shape == (BATCH, OUTPUT_DIM), out_bf16.shape
    assert jnp.allclose(out_bf16, ref, atol=3e-2, rtol=3e-2), "bf16 path mismatch"

    print("KERNEL_OK")
</pallas_src>

<mosaic_0001>
module attributes {stable_mosaic.version = 11 : i64} {
  func.func @_fused_kernel(%arg0: i32, %arg1: memref<8x32xf32, #tpu.memory_space<vmem>>, %arg2: memref<32x256xf32, #tpu.memory_space<vmem>>, %arg3: memref<1x256xf32, #tpu.memory_space<vmem>>, %arg4: memref<1x256xf32, #tpu.memory_space<vmem>>, %arg5: memref<1x256xf32, #tpu.memory_space<vmem>>, %arg6: memref<256x128xf32, #tpu.memory_space<vmem>>, %arg7: memref<1x128xf32, #tpu.memory_space<vmem>>, %arg8: memref<8x128xf32, #tpu.memory_space<vmem>>) attributes {dimension_semantics = [#tpu.dimension_semantics<parallel>], iteration_bounds = array<i64: 1>, scalar_prefetch = 0 : i64, scratch_operands = 0 : i64, tpu.core_type = #tpu.core_type<tc>, window_params = [{transform_indices = @transform_0, window_bounds = array<i64: 8, 32>}, {pipeline_mode = #tpu.pipeline_mode<synchronous>, transform_indices = @transform_1, window_bounds = array<i64: 32, 256>}, {pipeline_mode = #tpu.pipeline_mode<synchronous>, transform_indices = @transform_2, window_bounds = array<i64: 1, 256>}, {pipeline_mode = #tpu.pipeline_mode<synchronous>, transform_indices = @transform_3, window_bounds = array<i64: 1, 256>}, {pipeline_mode = #tpu.pipeline_mode<synchronous>, transform_indices = @transform_4, window_bounds = array<i64: 1, 256>}, {pipeline_mode = #tpu.pipeline_mode<synchronous>, transform_indices = @transform_5, window_bounds = array<i64: 256, 128>}, {pipeline_mode = #tpu.pipeline_mode<synchronous>, transform_indices = @transform_6, window_bounds = array<i64: 1, 128>}, {transform_indices = @transform_7, window_bounds = array<i64: 8, 128>}]} {
    %c0 = arith.constant 0 : index
    %c0_0 = arith.constant 0 : index
    %0 = vector.load %arg2[%c0, %c0_0] : memref<32x256xf32, #tpu.memory_space<vmem>>, vector<32x256xf32>
    %c0_1 = arith.constant 0 : index
    %c0_2 = arith.constant 0 : index
    %1 = vector.load %arg1[%c0_1, %c0_2] : memref<8x32xf32, #tpu.memory_space<vmem>>, vector<8x32xf32>
    %cst = arith.constant dense<0.000000e+00> : vector<8x256xf32>
    %2 = tpu.matmul %1, %0, %cst {dimension_numbers = #tpu.dot_dimension_numbers<[1], [0], [0], [1], [0, 0, 1, 1], [], []>} : vector<8x32xf32>, vector<32x256xf32>, vector<8x256xf32> -> vector<8x256xf32>
    %c0_3 = arith.constant 0 : index
    %c0_4 = arith.constant 0 : index
    %3 = vector.load %arg3[%c0_3, %c0_4] : memref<1x256xf32, #tpu.memory_space<vmem>>, vector<1x256xf32>
    %4 = vector.broadcast %3 : vector<1x256xf32> to vector<8x256xf32>
    %5 = arith.addf %2, %4 : vector<8x256xf32>
    %6 = vector.extract_strided_slice %5 {offsets = [0, 0], sizes = [8, 128], strides = [1, 1]} : vector<8x256xf32> to vector<8x128xf32>
    %c0_5 = arith.constant 0 : index
    %c0_6 = arith.constant 0 : index
    %7 = vector.load %arg4[%c0_5, %c0_6] : memref<1x256xf32, #tpu.memory_space<vmem>>, vector<1x128xf32>
    %c0_7 = arith.constant 0 : index
    %c0_8 = arith.constant 0 : index
    %8 = vector.load %arg5[%c0_7, %c0_8] : memref<1x256xf32, #tpu.memory_space<vmem>>, vector<1x128xf32>
    %cst_9 = arith.constant dense<0.000000e+00> : vector<8xf32>
    %9 = vector.multi_reduction <add>, %6, %cst_9 [1] : vector<8x128xf32> to vector<8xf32>
    %10 = vector.shape_cast %9 : vector<8xf32> to vector<8x1xf32>
    %cst_10 = arith.constant 1.280000e+02 : f32
    %11 = vector.broadcast %cst_10 : f32 to vector<8x1xf32>
    %12 = arith.divf %10, %11 : vector<8x1xf32>
    %13 = vector.broadcast %12 : vector<8x1xf32> to vector<8x128xf32>
    %14 = arith.subf %6, %13 : vector<8x128xf32>
    %15 = arith.mulf %14, %14 : vector<8x128xf32>
    %cst_11 = arith.constant dense<0.000000e+00> : vector<8xf32>
    %16 = vector.multi_reduction <add>, %15, %cst_11 [1] : vector<8x128xf32> to vector<8xf32>
    %17 = vector.shape_cast %16 : vector<8xf32> to vector<8x1xf32>
    %cst_12 = arith.constant 1.280000e+02 : f32
    %18 = vector.broadcast %cst_12 : f32 to vector<8x1xf32>
    %19 = arith.divf %17, %18 : vector<8x1xf32>
    %cst_13 = arith.constant 9.99999974E-6 : f32
    %20 = vector.broadcast %cst_13 : f32 to vector<8x1xf32>
    %21 = arith.addf %19, %20 : vector<8x1xf32>
    %22 = math.rsqrt %21 : vector<8x1xf32>
    %23 = vector.broadcast %22 : vector<8x1xf32> to vector<8x128xf32>
    %24 = arith.mulf %14, %23 : vector<8x128xf32>
    %25 = vector.broadcast %7 : vector<1x128xf32> to vector<8x128xf32>
    %26 = arith.mulf %24, %25 : vector<8x128xf32>
    %27 = vector.broadcast %8 : vector<1x128xf32> to vector<8x128xf32>
    %28 = arith.addf %26, %27 : vector<8x128xf32>
    %29 = arith.negf %28 : vector<8x128xf32>
    %30 = math.exp %29 : vector<8x128xf32>
    %cst_14 = arith.constant 1.000000e+00 : f32
    %31 = vector.broadcast %cst_14 : f32 to vector<8x128xf32>
    %32 = arith.addf %31, %30 : vector<8x128xf32>
    %33 = arith.divf %31, %32 : vector<8x128xf32>
    %34 = arith.mulf %28, %33 : vector<8x128xf32>
    %35 = vector.extract_strided_slice %5 {offsets = [0, 128], sizes = [8, 128], strides = [1, 1]} : vector<8x256xf32> to vector<8x128xf32>
    %c0_15 = arith.constant 0 : index
    %c128 = arith.constant 128 : index
    %36 = vector.load %arg4[%c0_15, %c128] : memref<1x256xf32, #tpu.memory_space<vmem>>, vector<1x128xf32>
    %c0_16 = arith.constant 0 : index
    %c128_17 = arith.constant 128 : index
    %37 = vector.load %arg5[%c0_16, %c128_17] : memref<1x256xf32, #tpu.memory_space<vmem>>, vector<1x128xf32>
    %cst_18 = arith.constant dense<0.000000e+00> : vector<8xf32>
    %38 = vector.multi_reduction <add>, %35, %cst_18 [1] : vector<8x128xf32> to vector<8xf32>
    %39 = vector.shape_cast %38 : vector<8xf32> to vector<8x1xf32>
    %cst_19 = arith.constant 1.280000e+02 : f32
    %40 = vector.broadcast %cst_19 : f32 to vector<8x1xf32>
    %41 = arith.divf %39, %40 : vector<8x1xf32>
    %42 = vector.broadcast %41 : vector<8x1xf32> to vector<8x128xf32>
    %43 = arith.subf %35, %42 : vector<8x128xf32>
    %44 = arith.mulf %43, %43 : vector<8x128xf32>
    %cst_20 = arith.constant dense<0.000000e+00> : vector<8xf32>
    %45 = vector.multi_reduction <add>, %44, %cst_20 [1] : vector<8x128xf32> to vector<8xf32>
    %46 = vector.shape_cast %45 : vector<8xf32> to vector<8x1xf32>
    %cst_21 = arith.constant 1.280000e+02 : f32
    %47 = vector.broadcast %cst_21 : f32 to vector<8x1xf32>
    %48 = arith.divf %46, %47 : vector<8x1xf32>
    %cst_22 = arith.constant 9.99999974E-6 : f32
    %49 = vector.broadcast %cst_22 : f32 to vector<8x1xf32>
    %50 = arith.addf %48, %49 : vector<8x1xf32>
    %51 = math.rsqrt %50 : vector<8x1xf32>
    %52 = vector.broadcast %51 : vector<8x1xf32> to vector<8x128xf32>
    %53 = arith.mulf %43, %52 : vector<8x128xf32>
    %54 = vector.broadcast %36 : vector<1x128xf32> to vector<8x128xf32>
    %55 = arith.mulf %53, %54 : vector<8x128xf32>
    %56 = vector.broadcast %37 : vector<1x128xf32> to vector<8x128xf32>
    %57 = arith.addf %55, %56 : vector<8x128xf32>
    %58 = arith.negf %57 : vector<8x128xf32>
    %59 = math.exp %58 : vector<8x128xf32>
    %cst_23 = arith.constant 1.000000e+00 : f32
    %60 = vector.broadcast %cst_23 : f32 to vector<8x128xf32>
    %61 = arith.addf %60, %59 : vector<8x128xf32>
    %62 = arith.divf %60, %61 : vector<8x128xf32>
    %63 = arith.mulf %57, %62 : vector<8x128xf32>
    %64 = tpu.concatenate %34, %63 in 1 : vector<8x128xf32>, vector<8x128xf32> -> vector<8x256xf32>
    %c0_24 = arith.constant 0 : index
    %c0_25 = arith.constant 0 : index
    %65 = vector.load %arg6[%c0_24, %c0_25] : memref<256x128xf32, #tpu.memory_space<vmem>>, vector<256x128xf32>
    %cst_26 = arith.constant dense<0.000000e+00> : vector<8x128xf32>
    %66 = tpu.matmul %64, %65, %cst_26 {dimension_numbers = #tpu.dot_dimension_numbers<[1], [0], [0], [1], [0, 0, 1, 1], [], []>} : vector<8x256xf32>, vector<256x128xf32>, vector<8x128xf32> -> vector<8x128xf32>
    %c0_27 = arith.constant 0 : index
    %c0_28 = arith.constant 0 : index
    %67 = vector.load %arg7[%c0_27, %c0_28] : memref<1x128xf32, #tpu.memory_space<vmem>>, vector<1x128xf32>
    %68 = vector.broadcast %67 : vector<1x128xf32> to vector<8x128xf32>
    %69 = arith.addf %66, %68 : vector<8x128xf32>
    %c0_29 = arith.constant 0 : index
    %c0_30 = arith.constant 0 : index
    %70 = vector.load %arg8[%c0_29, %c0_30] : memref<8x128xf32, #tpu.memory_space<vmem>>, vector<8x128xf32>
    tpu.vector_store %arg8[%c0_29, %c0_30], %69 {strides = array<i32>} : memref<8x128xf32, #tpu.memory_space<vmem>>, vector<8x128xf32>,
    return
  }
  func.func @transform_0(%arg0: i32) -> (i32, i32) {
    %c0_i32 = arith.constant 0 : i32
    %c0_i32_0 = arith.constant 0 : i32
    return %arg0, %c0_i32 : i32, i32
  }
  func.func @transform_1(%arg0: i32) -> (i32, i32) {
    %c0_i32 = arith.constant 0 : i32
    %c0_i32_0 = arith.constant 0 : i32
    %c0_i32_1 = arith.constant 0 : i32
    return %c0_i32, %c0_i32_0 : i32, i32
  }
  func.func @transform_2(%arg0: i32) -> (i32, i32) {
    %c0_i32 = arith.constant 0 : i32
    %c0_i32_0 = arith.constant 0 : i32
    %c0_i32_1 = arith.constant 0 : i32
    return %c0_i32, %c0_i32_0 : i32, i32
  }
  func.func @transform_3(%arg0: i32) -> (i32, i32) {
    %c0_i32 = arith.constant 0 : i32
    %c0_i32_0 = arith.constant 0 : i32
    %c0_i32_1 = arith.constant 0 : i32
    return %c0_i32, %c0_i32_0 : i32, i32
  }
  func.func @transform_4(%arg0: i32) -> (i32, i32) {
    %c0_i32 = arith.constant 0 : i32
    %c0_i32_0 = arith.constant 0 : i32
    %c0_i32_1 = arith.constant 0 : i32
    return %c0_i32, %c0_i32_0 : i32, i32
  }
  func.func @transform_5(%arg0: i32) -> (i32, i32) {
    %c0_i32 = arith.constant 0 : i32
    %c0_i32_0 = arith.constant 0 : i32
    %c0_i32_1 = arith.constant 0 : i32
    return %c0_i32, %c0_i32_0 : i32, i32
  }
  func.func @transform_6(%arg0: i32) -> (i32, i32) {
    %c0_i32 = arith.constant 0 : i32
    %c0_i32_0 = arith.constant 0 : i32
    %c0_i32_1 = arith.constant 0 : i32
    return %c0_i32, %c0_i32_0 : i32, i32
  }
  func.func @transform_7(%arg0: i32) -> (i32, i32) {
    %c0_i32 = arith.constant 0 : i32
    %c0_i32_0 = arith.constant 0 : i32
    return %arg0, %c0_i32 : i32, i32
  }
}

</mosaic_0001>

<llo_original>
// kernel: tpu_custom_call.1
$region0: #{tpu_custom_call.1}
  #allocation0 [shape = 'u32[]', space=smem, size = 0x4, offset = 0x4, fixed_abs, tag = 'smem constant byte address 0x4 - core index']
  #allocation1 [shape = 'u32[72,128]{1,0:T(1,128)}', space=vmem, size = 0x9000, scoped, tag = 'internal scratch']
  %s0 = inlined_call_operand.hbm [shape: f32[8,32], index: 0, kind: input, shape index: {}]
  %s1 = inlined_call_operand.hbm [shape: f32[32,256], index: 1, kind: input, shape index: {}]
  %s2 = inlined_call_operand.hbm [shape: f32[1,256], index: 2, kind: input, shape index: {}]
  %s3 = inlined_call_operand.vmem [shape: f32[1,256], index: 3, kind: input, shape index: {}]
  %s4 = inlined_call_operand.hbm [shape: f32[1,256], index: 4, kind: input, shape index: {}]
  %s5 = inlined_call_operand.hbm [shape: f32[256,128], index: 5, kind: input, shape index: {}]
  %s6 = inlined_call_operand.vmem [shape: f32[1,128], index: 6, kind: input, shape index: {}]
  %s7 = inlined_call_operand.hbm [shape: f32[8,128], index: 7, kind: output, shape index: {}]
  %s8 = sld [smem:[#allocation0]]
  $region58: #{tpu_custom_call.1} parent=0
    _
  %s10 = ssub.s32 1, %s8
  %s11 = scalar_select 0, %s10, %s8
  $region1: #{tpu_custom_call.1} parent=0
    #allocation2 [shape = 'u8[4096]{0}', space=vmem, size = 0x1000, scoped, tag = 'input window, operand 0, single buffered']
    #allocation3 [shape = 's32[1]{0}', space=sflag, size = 0x4, scoped, tag = 'scoped memory for tpu_custom_call.1']
    #allocation4 [shape = 's32[1]{0}', space=sflag, size = 0x4, scoped, tag = 'scoped memory for tpu_custom_call.1']
    #allocation5 [shape = 'u8[32768]{0}', space=vmem, size = 0x8000, scoped, tag = 'input window, operand 1, single buffered']
    #allocation6 [shape = 's32[1]{0}', space=sflag, size = 0x4, scoped, tag = 'scoped memory for tpu_custom_call.1']
    #allocation7 [shape = 'u8[1024]{0}', space=vmem, size = 0x400, scoped, tag = 'input window, operand 2, single buffered']
    #allocation8 [shape = 'u8[1024]{0}', space=vmem, size = 0x400, scoped, tag = 'input window, operand 4, single buffered']
    #allocation9 [shape = 's32[1]{0}', space=sflag, size = 0x4, scoped, tag = 'scoped memory for tpu_custom_call.1']
    #allocation10 [shape = 'u8[131072]{0}', space=vmem, size = 0x20000, scoped, tag = 'input window, operand 5, single buffered']
    #allocation11 [shape = 'u8[4096]{0}', space=vmem, size = 0x1000, scoped, tag = 'output window, operand 0, single buffered']
    %12 = vsyncpa [#allocation3], 0
    %13 = vsyncpa [#allocation6], 0
    %14 = vsyncpa [#allocation9], 0
    %15 = vsyncpa [#allocation4], 0
    // Predicated region
    $region2: #{tpu_custom_call.1} parent=1 // pred_check
      _
    $region3: #{tpu_custom_call.1} parent=1 // pred_check_branch
      %17 = sbr.rel (0) target = $region5
    $region4: #{tpu_custom_call.1} parent=1 // pred_region
      %19 = vsyncadd [#allocation3], 0
      %s21 = sshll.u32 %s0, 4
      %s22 = int_to_ptr.hbm [resolvable:$true] %s21
      %s23 = sshll.u32 [#allocation2], 4
      %s24 = int_to_ptr.vmem [resolvable:$true] %s23
      %26 = dma.hbm_to_vmem [thread:$0]  %s22, 128, %s24, [#allocation3]
    $region5: #{tpu_custom_call.1} parent=1 // pred_fallthru
      _
    // Predicated region
    $region6: #{tpu_custom_call.1} parent=1 // pred_check
      _
    $region7: #{tpu_custom_call.1} parent=1 // pred_check_branch
      %28 = sbr.rel (0) target = $region9
    $region8: #{tpu_custom_call.1} parent=1 // pred_region
      %30 = vsyncadd [#allocation6], 0
      %s31 = sshll.u32 %s1, 4
      %s32 = int_to_ptr.hbm [resolvable:$true] %s31
      %s33 = sshll.u32 [#allocation5], 4
      %s34 = int_to_ptr.vmem [resolvable:$true] %s33
      %39 = dma.hbm_to_vmem [thread:$0]  %s32, 1024, %s34, [#allocation6], 256, 256, 16
    $region9: #{tpu_custom_call.1} parent=1 // pred_fallthru
      _
    // Predicated region
    $region10: #{tpu_custom_call.1} parent=1 // pred_check
      _
    $region11: #{tpu_custom_call.1} parent=1 // pred_check_branch
      %41 = sbr.rel (0) target = $region13
    $region12: #{tpu_custom_call.1} parent=1 // pred_region
      %43 = vsyncadd [#allocation6], 0
      %s45 = sshll.u32 %s2, 4
      %s46 = int_to_ptr.hbm [resolvable:$true] %s45
      %s47 = sshll.u32 [#allocation7], 4
      %s48 = int_to_ptr.vmem [resolvable:$true] %s47
      %50 = dma.hbm_to_vmem [thread:$0]  %s46, 32, %s48, [#allocation6]
    $region13: #{tpu_custom_call.1} parent=1 // pred_fallthru
      _
    // Predicated region
    $region14: #{tpu_custom_call.1} parent=1 // pred_check
      _
    $region15: #{tpu_custom_call.1} parent=1 // pred_check_branch
      %52 = sbr.rel (0) target = $region17
    $region16: #{tpu_custom_call.1} parent=1 // pred_region
      _
    $region17: #{tpu_custom_call.1} parent=1 // pred_fallthru
      _
    // Predicated region
    $region18: #{tpu_custom_call.1} parent=1 // pred_check
      _
    $region19: #{tpu_custom_call.1} parent=1 // pred_check_branch
      %54 = sbr.rel (0) target = $region21
    $region20: #{tpu_custom_call.1} parent=1 // pred_region
      %56 = vsyncadd [#allocation9], 0
      %s58 = sshll.u32 %s4, 4
      %s59 = int_to_ptr.hbm [resolvable:$true] %s58
      %s60 = sshll.u32 [#allocation8], 4
      %s61 = int_to_ptr.vmem [resolvable:$true] %s60
      %63 = dma.hbm_to_vmem [thread:$0]  %s59, 32, %s61, [#allocation9]
    $region21: #{tpu_custom_call.1} parent=1 // pred_fallthru
      _
    // Predicated region
    $region22: #{tpu_custom_call.1} parent=1 // pred_check
      _
    $region23: #{tpu_custom_call.1} parent=1 // pred_check_branch
      %65 = sbr.rel (0) target = $region25
    $region24: #{tpu_custom_call.1} parent=1 // pred_region
      %67 = vsyncadd [#allocation9], 0
      %s68 = sshll.u32 %s5, 4
      %s69 = int_to_ptr.hbm [resolvable:$true] %s68
      %s70 = sshll.u32 [#allocation10], 4
      %s71 = int_to_ptr.vmem [resolvable:$true] %s70
      %76 = dma.hbm_to_vmem [thread:$0]  %s69, 4096, %s71, [#allocation9], 128, 128, 8
    $region25: #{tpu_custom_call.1} parent=1 // pred_fallthru
      _
    // Predicated region
    $region26: #{tpu_custom_call.1} parent=1 // pred_check
      _
    $region27: #{tpu_custom_call.1} parent=1 // pred_check_branch
      %78 = sbr.rel (0) target = $region29
    $region28: #{tpu_custom_call.1} parent=1 // pred_region
      _
    $region29: #{tpu_custom_call.1} parent=1 // pred_fallthru
      _
    // Predicated region
    $region30: #{tpu_custom_call.1} parent=1 // pred_check
      _
    $region31: #{tpu_custom_call.1} parent=1 // pred_check_branch
      %80 = sbr.rel (0) target = $region33
    $region32: #{tpu_custom_call.1} parent=1 // pred_region
      %82 = dma.done [#allocation3], 128
    $region33: #{tpu_custom_call.1} parent=1 // pred_fallthru
      _
    // Predicated region
    $region34: #{tpu_custom_call.1} parent=1 // pred_check
      _
    $region35: #{tpu_custom_call.1} parent=1 // pred_check_branch
      %84 = sbr.rel (0) target = $region37
    $region36: #{tpu_custom_call.1} parent=1 // pred_region
      %86 = dma.done [#allocation6], 1024
    $region37: #{tpu_custom_call.1} parent=1 // pred_fallthru
      _
    // Predicated region
    $region38: #{tpu_custom_call.1} parent=1 // pred_check
      _
    $region39: #{tpu_custom_call.1} parent=1 // pred_check_branch
      %88 = sbr.rel (0) target = $region41
    $region40: #{tpu_custom_call.1} parent=1 // pred_region
      %90 = dma.done [#allocation6], 32
    $region41: #{tpu_custom_call.1} parent=1 // pred_fallthru
      _
    // Predicated region
    $region42: #{tpu_custom_call.1} parent=1 // pred_check
      _
    $region43: #{tpu_custom_call.1} parent=1 // pred_check_branch
      %92 = sbr.rel (0) target = $region45
    $region44: #{tpu_custom_call.1} parent=1 // pred_region
      %94 = dma.done [#allocation9], 32
    $region45: #{tpu_custom_call.1} parent=1 // pred_fallthru
      _
    // Predicated region
    $region46: #{tpu_custom_call.1} parent=1 // pred_check
      _
    $region47: #{tpu_custom_call.1} parent=1 // pred_check_branch
      %96 = sbr.rel (0) target = $region49
    $region48: #{tpu_custom_call.1} parent=1 // pred_region
      %98 = dma.done [#allocation9], 4096
    $region49: #{tpu_custom_call.1} parent=1 // pred_fallthru
      _
    %v99 = vld [vmem:[#allocation5] sm:$0xff]
    %v100 = vld [vmem:[#allocation5 + $0x8] sm:$0xff]
    %v101 = vld [vmem:[#allocation5 + $0x10] sm:$0xff]
    %v102 = vld [vmem:[#allocation5 + $0x18] sm:$0xff]
    %v103 = vld [vmem:[#allocation5 + $0x20] sm:$0xff]
    %v104 = vld [vmem:[#allocation5 + $0x28] sm:$0xff]
    %v105 = vld [vmem:[#allocation5 + $0x30] sm:$0xff]
    %v106 = vld [vmem:[#allocation5 + $0x38] sm:$0xff]
    %v107 = vld [vmem:[#allocation2] sm:$0xff]
    %v108 = vld [vmem:[#allocation7] sm:$0x3]
    %v110 = vperm.slane %v108, 0
    %v111 = vperm.slane %v108, 1
    %vm114 = vcmask 261120
    %v116 = vsel %vm114, %v107, 0
    %118 = vmatpush.msra.mxu0 0.0
    %119 = vmatpush.msra.mxu0 0.0
    %120 = vmatpush.msra.mxu0 0.0
    %121 = vmatpush.msra.mxu0 0.0
    %122 = vmatpush.msra.mxu0 0.0
    %123 = vmatpush.msra.mxu0 0.0
    %124 = vmatpush.msra.mxu0 0.0
    %125 = vmatpush.msra.mxu0 0.0
    %126 = vmatpush.msra.mxu0 0.0
    %127 = vmatpush.msra.mxu0 0.0
    %128 = vmatpush.msra.mxu0 0.0
    %129 = vmatpush.msra.mxu0 0.0
    %130 = vmatpush.msra.mxu0 %v105
    %131 = vmatpush.msra.mxu0 %v103
    %132 = vmatpush.msra.mxu0 %v101
    %133 = vmatpush.msra.mxu0 %v99
    %134 = vmatmul.f32.gmra.mxu0 %v116
    %v135 = vpop.f32.mrf.mxu0
    %v136 = vadd.f32 %v110, %v135
    %137 = vdwg.mxu0
    %138 = vmatpush.msra.mxu0 0.0
    %139 = vmatpush.msra.mxu0 0.0
    %140 = vmatpush.msra.mxu0 0.0
    %141 = vmatpush.msra.mxu0 0.0
    %142 = vmatpush.msra.mxu0 0.0
    %143 = vmatpush.msra.mxu0 0.0
    %144 = vmatpush.msra.mxu0 0.0
    %145 = vmatpush.msra.mxu0 0.0
    %146 = vmatpush.msra.mxu0 0.0
    %147 = vmatpush.msra.mxu0 0.0
    %148 = vmatpush.msra.mxu0 0.0
    %149 = vmatpush.msra.mxu0 0.0
    %150 = vmatpush.msra.mxu0 %v106
    %151 = vmatpush.msra.mxu0 %v104
    %152 = vmatpush.msra.mxu0 %v102
    %153 = vmatpush.msra.mxu0 %v100
    %154 = vmatmul.f32.gmra.mxu0 %v116
    %v155 = vpop.f32.mrf.mxu0
    %v156 = vadd.f32 %v111, %v155
    %157 = vdwg.mxu0
    %v158 = vld [vmem:[%s3] sm:$0x1]
    %v159 = vld [vmem:[#allocation8] sm:$0x1]
    %160 = vadd.xlane.f32.xlu0 %v136
    %v161 = vpop.xlane.xlu0 %160
    %v162 = vrcp.pop 128.0
    %v163 = vmul.f32 128.0, %v162
    %v164 = vsub.f32 1.0, %v163
    %v165 = vmul.f32 %v162, %v164
    %v166 = vadd.f32 %v162, %v165
    %vm167 = vweird.f32 %v162
    %v168 = vsel %vm167, %v162, %v166
    %v169 = vmul.f32 %v161, %v168
    %v170 = vsub.f32 %v136, %v169
    %v171 = vmul.f32 %v170, %v170
    %172 = vadd.xlane.f32.xlu0 %v171
    %v173 = vpop.xlane.xlu0 %172
    %v174 = vmul.f32 %v173, %v168
    %v175 = vadd.f32 %v174, 1e-05
    %v176 = vrsqrt.pop %v175
    %v177 = vmul.f32 %v176, %v175
    %v178 = vmul.f32 %v177, %v176
    %v179 = vmul.f32 0.5, %v178
    %v180 = vsub.f32 1.5, %v179
    %v181 = vmul.f32 %v176, %v180
    %vm182 = vweird.f32 %v175
    %vm183 = vweird.f32 %v176
    %vm184 = vmor %vm182, %vm183
    %v185 = vsel %vm184, %v176, %v181
    %v186 = vmul.f32 %v170, %v185
    %v188 = vperm.slane %v158, 0
    %v190 = vmul.f32 %v186, %v188
    %v192 = vperm.slane %v159, 0
    %v194 = vadd.f32 %v190, %v192
    %v195 = vxor.u32 %v194, 2147483648
    %v196 = vmul.f32 %v195, 1.442695
    %v197 = vpow.pop %v196
    %v198 = vadd.f32 %v197, 1.0
    %v199 = vrcp.pop %v198
    %v200 = vmul.f32 %v198, %v199
    %v201 = vsub.f32 1.0, %v200
    %v202 = vmul.f32 %v199, %v201
    %v203 = vadd.f32 %v199, %v202
    %vm204 = vweird.f32 %v198
    %vm205 = vweird.f32 %v199
    %vm206 = vmor %vm204, %vm205
    %v207 = vsel %vm206, %v199, %v203
    %v208 = vand.u32 2147483647, %v198
    %vm209 = vcmp.eq.f32.partialorder %v208, 8.507059e+37
    %v210 = vand.u32 %v198, 2147483648
    %v211 = vor.u32 1.1754944e-38, %v210
    %v212 = vsel %vm209, %v211, %v207
    %v213 = vmul.f32 1.0, %v212
    %v214 = vmul.f32 %v194, %v213
    %v215 = vld [vmem:[%s3 + $0x1] sm:$0x1]
    %v216 = vld [vmem:[#allocation8 + $0x1] sm:$0x1]
    %217 = vadd.xlane.f32.xlu0 %v156
    %v218 = vpop.xlane.xlu0 %217
    %v219 = vmul.f32 %v218, %v168
    %v220 = vsub.f32 %v156, %v219
    %v221 = vmul.f32 %v220, %v220
    %222 = vadd.xlane.f32.xlu0 %v221
    %v223 = vpop.xlane.xlu0 %222
    %v224 = vmul.f32 %v223, %v168
    %v225 = vadd.f32 %v224, 1e-05
    %v226 = vrsqrt.pop %v225
    %v227 = vmul.f32 %v226, %v225
    %v228 = vmul.f32 %v227, %v226
    %v229 = vmul.f32 0.5, %v228
    %v230 = vsub.f32 1.5, %v229
    %v231 = vmul.f32 %v226, %v230
    %vm232 = vweird.f32 %v225
    %vm233 = vweird.f32 %v226
    %vm234 = vmor %vm232, %vm233
    %v235 = vsel %vm234, %v226, %v231
    %v236 = vmul.f32 %v220, %v235
    %v238 = vperm.slane %v215, 0
    %v240 = vmul.f32 %v236, %v238
    %v242 = vperm.slane %v216, 0
    %v244 = vadd.f32 %v240, %v242
    %v245 = vxor.u32 %v244, 2147483648
    %v246 = vmul.f32 %v245, 1.442695
    %v247 = vpow.pop %v246
    %v248 = vadd.f32 %v247, 1.0
    %v249 = vrcp.pop %v248
    %v250 = vmul.f32 %v248, %v249
    %v251 = vsub.f32 1.0, %v250
    %v252 = vmul.f32 %v249, %v251
    %v253 = vadd.f32 %v249, %v252
    %vm254 = vweird.f32 %v248
    %vm255 = vweird.f32 %v249
    %vm256 = vmor %vm254, %vm255
    %v257 = vsel %vm256, %v249, %v253
    %v258 = vand.u32 2147483647, %v248
    %vm259 = vcmp.eq.f32.partialorder %v258, 8.507059e+37
    %v260 = vand.u32 %v248, 2147483648
    %v261 = vor.u32 1.1754944e-38, %v260
    %v262 = vsel %vm259, %v261, %v257
    %v263 = vmul.f32 1.0, %v262
    %v264 = vmul.f32 %v244, %v263
    %v265 = vld [vmem:[#allocation10] sm:$0xff]
    %v266 = vld [vmem:[#allocation10 + $0x8] sm:$0xff]
    %v267 = vld [vmem:[#allocation10 + $0x10] sm:$0xff]
    %v268 = vld [vmem:[#allocation10 + $0x18] sm:$0xff]
    %v269 = vld [vmem:[#allocation10 + $0x20] sm:$0xff]
    %v270 = vld [vmem:[#allocation10 + $0x28] sm:$0xff]
    %v271 = vld [vmem:[#allocation10 + $0x30] sm:$0xff]
    %v272 = vld [vmem:[#allocation10 + $0x38] sm:$0xff]
    %v273 = vld [vmem:[#allocation10 + $0x40] sm:$0xff]
    %v274 = vld [vmem:[#allocation10 + $0x48] sm:$0xff]
    %v275 = vld [vmem:[#allocation10 + $0x50] sm:$0xff]
    %v276 = vld [vmem:[#allocation10 + $0x58] sm:$0xff]
    %v277 = vld [vmem:[#allocation10 + $0x60] sm:$0xff]
    %v278 = vld [vmem:[#allocation10 + $0x68] sm:$0xff]
    %v279 = vld [vmem:[#allocation10 + $0x70] sm:$0xff]
    %v280 = vld [vmem:[#allocation10 + $0x78] sm:$0xff]
    %v281 = vld [vmem:[#allocation10 + $0x80] sm:$0xff]
    %v282 = vld [vmem:[#allocation10 + $0x88] sm:$0xff]
    %v283 = vld [vmem:[#allocation10 + $0x90] sm:$0xff]
    %v284 = vld [vmem:[#allocation10 + $0x98] sm:$0xff]
    %v285 = vld [vmem:[#allocation10 + $0xa0] sm:$0xff]
    %v286 = vld [vmem:[#allocation10 + $0xa8] sm:$0xff]
    %v287 = vld [vmem:[#allocation10 + $0xb0] sm:$0xff]
    %v288 = vld [vmem:[#allocation10 + $0xb8] sm:$0xff]
    %v289 = vld [vmem:[#allocation10 + $0xc0] sm:$0xff]
    %v290 = vld [vmem:[#allocation10 + $0xc8] sm:$0xff]
    %v291 = vld [vmem:[#allocation10 + $0xd0] sm:$0xff]
    %v292 = vld [vmem:[#allocation10 + $0xd8] sm:$0xff]
    %v293 = vld [vmem:[#allocation10 + $0xe0] sm:$0xff]
    %v294 = vld [vmem:[#allocation10 + $0xe8] sm:$0xff]
    %v295 = vld [vmem:[#allocation10 + $0xf0] sm:$0xff]
    %v296 = vld [vmem:[#allocation10 + $0xf8] sm:$0xff]
    %v297 = vld [vmem:[%s6] sm:$0x1]
    %v299 = vperm.slane %v297, 0
    %301 = vmatpush.msra.mxu0 %v280
    %302 = vmatpush.msra.mxu0 %v279
    %303 = vmatpush.msra.mxu0 %v278
    %304 = vmatpush.msra.mxu0 %v277
    %305 = vmatpush.msra.mxu0 %v276
    %306 = vmatpush.msra.mxu0 %v275
    %307 = vmatpush.msra.mxu0 %v274
    %308 = vmatpush.msra.mxu0 %v273
    %309 = vmatpush.msra.mxu0 %v272
    %310 = vmatpush.msra.mxu0 %v271
    %311 = vmatpush.msra.mxu0 %v270
    %312 = vmatpush.msra.mxu0 %v269
    %313 = vmatpush.msra.mxu0 %v268
    %314 = vmatpush.msra.mxu0 %v267
    %315 = vmatpush.msra.mxu0 %v266
    %316 = vmatpush.msra.mxu0 %v265
    %317 = vmatmul.f32.gmra.mxu0 %v214
    %v318 = vpop.f32.mrf.mxu0
    %v319 = vadd.f32 %v299, %v318
    %320 = vdwg.mxu0
    %321 = vmatpush.msra.mxu0 %v296
    %322 = vmatpush.msra.mxu0 %v295
    %323 = vmatpush.msra.mxu0 %v294
    %324 = vmatpush.msra.mxu0 %v293
    %325 = vmatpush.msra.mxu0 %v292
    %326 = vmatpush.msra.mxu0 %v291
    %327 = vmatpush.msra.mxu0 %v290
    %328 = vmatpush.msra.mxu0 %v289
    %329 = vmatpush.msra.mxu0 %v288
    %330 = vmatpush.msra.mxu0 %v287
    %331 = vmatpush.msra.mxu0 %v286
    %332 = vmatpush.msra.mxu0 %v285
    %333 = vmatpush.msra.mxu0 %v284
    %334 = vmatpush.msra.mxu0 %v283
    %335 = vmatpush.msra.mxu0 %v282
    %336 = vmatpush.msra.mxu0 %v281
    %337 = vmatmul.f32.gmra.mxu0 %v264
    %v338 = vpop.f32.mrf.mxu0
    %v339 = vadd.f32 %v319, %v338
    %340 = vdwg.mxu0
    %341 = vst [vmem:[#allocation11] sm:$0xff] %v339
    // Predicated region
    $region50: #{tpu_custom_call.1} parent=1 // pred_check
      _
    $region51: #{tpu_custom_call.1} parent=1 // pred_check_branch
      %343 = sbr.rel (0) target = $region53
    $region52: #{tpu_custom_call.1} parent=1 // pred_region
      %345 = vsyncadd [#allocation4], 0
      %s347 = sshll.u32 [#allocation11], 4
      %s348 = int_to_ptr.vmem [resolvable:$true] %s347
      %s349 = sshll.u32 %s7, 4
      %s350 = int_to_ptr.hbm [resolvable:$true] %s349
      %352 = dma.vmem_to_hbm [thread:$0]  %s348, 128, %s350, [#allocation4]
    $region53: #{tpu_custom_call.1} parent=1 // pred_fallthru
      _
    // Predicated region
    $region54: #{tpu_custom_call.1} parent=1 // pred_check
      _
    $region55: #{tpu_custom_call.1} parent=1 // pred_check_branch
      %354 = sbr.rel (0) target = $region57
    $region56: #{tpu_custom_call.1} parent=1 // pred_region
      %356 = dma.done [#allocation4], 128
    $region57: #{tpu_custom_call.1} parent=1 // pred_fallthru
      _
    %357 = vsyncpa [#allocation3], 1
    %358 = vsyncpa [#allocation6], 1
    %359 = vsyncpa [#allocation9], 1
    %360 = vsyncpa [#allocation4], 1

</llo_original>
